<compile_context>
chip_gen: v6e
topology: v6e:2x2x1
jax: 0.10.0
libtpu: 0.0.40
codegen_flags: <defaults>
</compile_context>

<pallas_src>
import functools

import jax
import jax.numpy as jnp
from jax.experimental import pallas as pl
from jax.experimental.pallas import tpu as pltpu

_LANES = 128
_BLOCK_BYTES = 4 * 1024 * 1024         # ~4 MiB per block (per review)
_VMEM_LIMIT_BYTES = 32 * 1024 * 1024   # 4x block pipelined = 16 MiB, 2x headroom
_MIN_KERNEL_BYTES = 256 * 1024         # below this, let XLA fuse a plain clip


def _clamp_kernel(x_ref, o_ref, *, min_val, max_val):
    # min_val / max_val are static Python scalars -> immediates on the VPU.
    o_ref[...] = jnp.clip(x_ref[...], min_val, max_val)


def _sublane_align(itemsize):
    # Native tilings: (8,128) f32, (16,128) bf16, (32,128) int8/fp8.
    return max(8, 32 // itemsize)


def _pick_block_rows(rows, itemsize):
    align = _sublane_align(itemsize)
    target = max(align, (_BLOCK_BYTES // (_LANES * itemsize)) // align * align)
    if rows <= 2 * align:
        # Tiny: one full-extent block (always a legal block shape).
        return rows
    if rows <= target:
        # Keep >=2 grid steps so both v7x TensorCores get work.
        half = pl.cdiv(rows, 2)
        return min(pl.cdiv(half, align) * align, target)
    return target


def _clamp_2d(x2d, min_val, max_val):
    rows, lanes = x2d.shape
    block_rows = _pick_block_rows(rows, x2d.dtype.itemsize)
    kernel = functools.partial(_clamp_kernel, min_val=min_val, max_val=max_val)
    return pl.pallas_call(
        kernel,
        out_shape=jax.ShapeDtypeStruct((rows, lanes), x2d.dtype),
        grid=(pl.cdiv(rows, block_rows),),
        in_specs=[pl.BlockSpec((block_rows, lanes), lambda i: (i, 0))],
        out_specs=pl.BlockSpec((block_rows, lanes), lambda i: (i, 0)),
        compiler_params=pltpu.CompilerParams(
            dimension_semantics=("parallel",),
            vmem_limit_bytes=_VMEM_LIMIT_BYTES),
    )(x2d)


def clamp_pallas(x, min_val=-1.0, max_val=1.0, *,
                 min_kernel_bytes=_MIN_KERNEL_BYTES):
    """Elementwise clamp of x to [min_val, max_val] via a Pallas TPU kernel."""
    orig_shape = x.shape
    n = x.size

    # Static bounds, cast to match the input's dtype family (no int->float
    # promotion surprises for integer tensors).
    if jnp.issubdtype(x.dtype, jnp.integer):
        min_val, max_val = int(min_val), int(max_val)
    else:
        min_val, max_val = float(min_val), float(max_val)

    nbytes = n * x.dtype.itemsize
    if n == 0 or n < _LANES or nbytes < min_kernel_bytes:
        # Tiny inputs: launch cost dominates and XLA can fuse the clip.
        return jnp.clip(x, min_val, max_val)

    if n % _LANES == 0:
        # Fast path: free lane-dense reshape, zero extra HBM copies.
        # A partial last block (rows % block_rows != 0) is masked by Pallas.
        rows = n // _LANES
        out2d = _clamp_2d(x.reshape(rows, _LANES), min_val, max_val)
        return out2d.reshape(orig_shape)

    # Ragged path: kernel over the 128-aligned prefix, plain clip for the
    # (<128-element) tail.  No full-array pad / slice round trips.
    flat = x.reshape(-1)
    aligned = (n // _LANES) * _LANES
    head = _clamp_2d(flat[:aligned].reshape(aligned // _LANES, _LANES),
                     min_val, max_val).reshape(-1)
    tail = jnp.clip(flat[aligned:], min_val, max_val)
    return jnp.concatenate([head, tail]).reshape(orig_shape)


if __name__ == "__main__":
    key = jax.random.PRNGKey(0)

    # NCHW feature map consistent with the module's typical use.
    x = jax.random.normal(key, (2, 4, 16, 16), dtype=jnp.float32) * 3.0
    ref = jnp.clip(x, -1.0, 1.0)

    # Default wrapper path (tiny input -> fused jnp.clip fallback).
    y_default = jax.block_until_ready(clamp_pallas(x))
    assert y_default.shape == x.shape and y_default.dtype == x.dtype
    assert jnp.array_equal(y_default, ref), "mismatch (fallback path)"

    # Force the Pallas kernel path on the same small input.
    y_kernel = jax.block_until_ready(
        clamp_pallas(x, -1.0, 1.0, min_kernel_bytes=0))
    assert y_kernel.shape == x.shape and y_kernel.dtype == x.dtype
    assert jnp.array_equal(y_kernel, ref), "mismatch (kernel fast path)"

    # Lane-aligned but sublane-ragged row count -> partial last grid block.
    x36 = jax.random.normal(jax.random.PRNGKey(1), (36, 128),
                            dtype=jnp.float32) * 3.0
    y36 = jax.block_until_ready(
        clamp_pallas(x36, -1.0, 1.0, min_kernel_bytes=0))
    assert jnp.array_equal(y36, jnp.clip(x36, -1.0, 1.0)), "mismatch (partial block)"

    # Ragged element count -> aligned-prefix kernel + tail clip.
    xr = jax.random.normal(jax.random.PRNGKey(2), (2, 4, 33),
                           dtype=jnp.float32) * 3.0
    yr = jax.block_until_ready(
        clamp_pallas(xr, -1.0, 1.0, min_kernel_bytes=0))
    assert yr.shape == xr.shape and yr.dtype == xr.dtype
    assert jnp.array_equal(yr, jnp.clip(xr, -1.0, 1.0)), "mismatch (ragged path)"

    # bf16 input exercises dtype-aware block sizing / (16,128) native tiling.
    xb = (jax.random.normal(jax.random.PRNGKey(3), (2, 4, 16, 16),
                            dtype=jnp.float32) * 3.0).astype(jnp.bfloat16)
    yb = jax.block_until_ready(
        clamp_pallas(xb, -1.0, 1.0, min_kernel_bytes=0))
    assert yb.dtype == jnp.bfloat16
    assert jnp.array_equal(yb, jnp.clip(xb, -1.0, 1.0)), "mismatch (bf16)"

    print("KERNEL_OK")
</pallas_src>

<mosaic_0001>
module attributes {stable_mosaic.version = 11 : i64} {
  func.func @_clamp_kernel(%arg0: i32, %arg1: memref<16x128xf32, #tpu.memory_space<vmem>>, %arg2: memref<16x128xf32, #tpu.memory_space<vmem>>) attributes {dimension_semantics = [#tpu.dimension_semantics<parallel>], iteration_bounds = array<i64: 1>, scalar_prefetch = 0 : i64, scratch_operands = 0 : i64, tpu.core_type = #tpu.core_type<tc>, window_params = [{transform_indices = @transform_0, window_bounds = array<i64: 16, 128>}, {transform_indices = @transform_1, window_bounds = array<i64: 16, 128>}]} {
    %c0 = arith.constant 0 : index
    %c0_0 = arith.constant 0 : index
    %0 = vector.load %arg1[%c0, %c0_0] : memref<16x128xf32, #tpu.memory_space<vmem>>, vector<16x128xf32>
    %cst = arith.constant -1.000000e+00 : f32
    %cst_1 = arith.constant 1.000000e+00 : f32
    %1 = vector.broadcast %cst : f32 to vector<16x128xf32>
    %2 = arith.maximumf %1, %0 : vector<16x128xf32>
    %3 = vector.broadcast %cst_1 : f32 to vector<16x128xf32>
    %4 = arith.minimumf %3, %2 : vector<16x128xf32>
    %c0_2 = arith.constant 0 : index
    %c0_3 = arith.constant 0 : index
    %5 = vector.load %arg2[%c0_2, %c0_3] : memref<16x128xf32, #tpu.memory_space<vmem>>, vector<16x128xf32>
    tpu.vector_store %arg2[%c0_2, %c0_3], %4 {strides = array<i32>} : memref<16x128xf32, #tpu.memory_space<vmem>>, vector<16x128xf32>,
    return
  }
  func.func @transform_0(%arg0: i32) -> (i32, i32) {
    %c0_i32 = arith.constant 0 : i32
    %c0_i32_0 = arith.constant 0 : i32
    return %arg0, %c0_i32 : i32, i32
  }
  func.func @transform_1(%arg0: i32) -> (i32, i32) {
    %c0_i32 = arith.constant 0 : i32
    %c0_i32_0 = arith.constant 0 : i32
    return %arg0, %c0_i32 : i32, i32
  }
}

</mosaic_0001>

<llo_original>
// kernel: tpu_custom_call.1
$region0: #{tpu_custom_call.1}
  #allocation0 [shape = 'u32[]', space=smem, size = 0x4, offset = 0x4, fixed_abs, tag = 'smem constant byte address 0x4 - core index']
  #allocation1 [shape = 'u32[144,128]{1,0:T(1,128)}', space=vmem, size = 0x12000, scoped, tag = 'internal scratch']
  %s0 = inlined_call_operand.hbm [shape: f32[16,128], index: 0, kind: input, shape index: {}]
  %s1 = inlined_call_operand.hbm [shape: f32[16,128], index: 1, kind: output, shape index: {}]
  %s2 = sld [smem:[#allocation0]]
  $region18: #{tpu_custom_call.1} parent=0
    _
  %s4 = ssub.s32 1, %s2
  %s5 = scalar_select 0, %s4, %s2
  $region1: #{tpu_custom_call.1} parent=0
    #allocation2 [shape = 'u8[8192]{0}', space=vmem, size = 0x2000, scoped, tag = 'input window, operand 0, single buffered']
    #allocation3 [shape = 's32[1]{0}', space=sflag, size = 0x4, scoped, tag = 'scoped memory for tpu_custom_call.1']
    #allocation4 [shape = 's32[1]{0}', space=sflag, size = 0x4, scoped, tag = 'scoped memory for tpu_custom_call.1']
    #allocation5 [shape = 'u8[8192]{0}', space=vmem, size = 0x2000, scoped, tag = 'output window, operand 0, single buffered']
    %6 = vsyncpa [#allocation3], 0
    %7 = vsyncpa [#allocation4], 0
    // Predicated region
    $region2: #{tpu_custom_call.1} parent=1 // pred_check
      _
    $region3: #{tpu_custom_call.1} parent=1 // pred_check_branch
      %9 = sbr.rel (0) target = $region5
    $region4: #{tpu_custom_call.1} parent=1 // pred_region
      %s11 = ssub.s32 256, 256
      %12 = vsyncadd [#allocation3], %s11
      %s13 = sshll.u32 [#allocation2], 4
      %s14 = int_to_ptr.vmem [resolvable:$true] %s13
      %19 = dma.hbm_to_vmem [thread:$0]  %s0, 256, %s14, [#allocation3], 128, 128, 8
    $region5: #{tpu_custom_call.1} parent=1 // pred_fallthru
      _
    // Predicated region
    $region6: #{tpu_custom_call.1} parent=1 // pred_check
      _
    $region7: #{tpu_custom_call.1} parent=1 // pred_check_branch
      %21 = sbr.rel (0) target = $region9
    $region8: #{tpu_custom_call.1} parent=1 // pred_region
      %22 = dma.done [#allocation3], 256
    $region9: #{tpu_custom_call.1} parent=1 // pred_fallthru
      _
    %v23 = vld [vmem:[#allocation2] sm:$0xff]
    %v24 = vld [vmem:[#allocation2 + $0x8] sm:$0xff]
    %v25 = vmax.f32 %v23, -1.0
    %v26 = vmax.f32 %v24, -1.0
    %v27 = vmin.f32 %v25, 1.0
    %v28 = vmin.f32 %v26, 1.0
    %29 = vst [vmem:[#allocation5] sm:$0xff] %v27
    %30 = vst [vmem:[#allocation5 + $0x8] sm:$0xff] %v28
    // Predicated region
    $region10: #{tpu_custom_call.1} parent=1 // pred_check
      _
    $region11: #{tpu_custom_call.1} parent=1 // pred_check_branch
      %32 = sbr.rel (0) target = $region13
    $region12: #{tpu_custom_call.1} parent=1 // pred_region
      %s34 = ssub.s32 256, 256
      %35 = vsyncadd [#allocation4], %s34
      %s36 = sshll.u32 [#allocation5], 4
      %s37 = int_to_ptr.vmem [resolvable:$true] %s36
      %42 = dma.vmem_to_hbm [thread:$0]  %s37, 256, %s1, [#allocation4], 128, 128, 8
    $region13: #{tpu_custom_call.1} parent=1 // pred_fallthru
      _
    // Predicated region
    $region14: #{tpu_custom_call.1} parent=1 // pred_check
      _
    $region15: #{tpu_custom_call.1} parent=1 // pred_check_branch
      %44 = sbr.rel (0) target = $region17
    $region16: #{tpu_custom_call.1} parent=1 // pred_region
      %45 = dma.done [#allocation4], 256
    $region17: #{tpu_custom_call.1} parent=1 // pred_fallthru
      _
    %46 = vsyncpa [#allocation3], 1
    %47 = vsyncpa [#allocation4], 1

</llo_original>
